<compile_context>
chip_gen: v5e
topology: v5e:2x2
jax: 0.10.0
libtpu: 0.0.40
codegen_flags: <defaults>
</compile_context>

<pallas_src>
import functools

import jax
import jax.numpy as jnp
from jax.experimental import pallas as pl
from jax.experimental.pallas import tpu as pltpu

_LANES = 128


def _round_up(x: int, m: int) -> int:
    return (x + m - 1) // m * m


def _padded_code_dim(C: int) -> int:
    """Smallest Cp >= C such that packed rows are lane-dense (Cp | 128 or 128 | Cp)."""
    if C % _LANES == 0:
        return C
    if _LANES % C == 0:
        return C
    if C < _LANES:
        cp = C
        while _LANES % cp != 0:
            cp += 1
        return cp
    return _round_up(C, _LANES)


def _wsl1_kernel(*refs, beta, has_cw, has_w):
    """Element-wise weighted smooth-L1 on one lane-dense tile.

    refs = (inp, tgt, [cw], [w_packed, expand], out)
      inp/tgt/out : (T, L)  model dtype
      cw          : (1, L)  f32  code weights tiled across the packed row
      w_packed    : (T, G)  anchor weights, one lane per packed anchor
      expand      : (G, L)  f32  0/1 matrix, lane l belongs to anchor l // Cp
    """
    it = iter(refs)
    inp_ref = next(it)
    tgt_ref = next(it)
    cw_ref = next(it) if has_cw else None
    w_ref = next(it) if has_w else None
    e_ref = next(it) if has_w else None
    out_ref = next(it)

    x = inp_ref[...].astype(jnp.float32)
    t = tgt_ref[...].astype(jnp.float32)
    # target = where(isnan(target), input, target)
    t = jnp.where(jnp.isnan(t), x, t)
    diff = x - t
    if has_cw:
        diff = diff * cw_ref[...]          # (1, L) sublane-broadcast
    n = jnp.abs(diff)
    if beta < 1e-5:
        loss = n
    else:
        # 0.5/beta precomputed in Python: multiply instead of divide.
        loss = jnp.where(n < beta, n * n * (0.5 / beta), n - 0.5 * beta)
    if has_w:
        # Expand packed anchor weights to per-lane weights on the (idle) MXU.
        w = jnp.dot(w_ref[...].astype(jnp.float32), e_ref[...],
                    preferred_element_type=jnp.float32)
        loss = loss * w
    out_ref[...] = loss.astype(out_ref.dtype)


def weighted_smooth_l1_loss(inp, target, code_weights=None, weights=None,
                            beta: float = 1.0 / 9.0, tile_rows: int = 2048):
    """JAX/Pallas equivalent of WeightedSmoothL1Loss.forward (no reduction).

    Args:
      inp:     (B, A, C) float tensor (any float dtype; bf16 supported).
      target:  (B, A, C) float tensor.
      code_weights: (C,) float or None.
      weights: (B, A) float or None.
      beta:    scalar float (L1 for beta < 1e-5).
      tile_rows: packed 128-lane rows per grid step.

    Returns:
      loss: (B, A, C) in the input dtype.
    """
    B, A, C = inp.shape
    N = B * A
    has_cw = code_weights is not None
    has_w = weights is not None

    Cp = _padded_code_dim(C)           # padded code dim (divisor/multiple of 128)
    L = max(_LANES, Cp)                # packed row length in lanes
    G = L // Cp                        # anchors per packed row
    Np = _round_up(N, G)
    R = Np // G

    inp2 = inp.reshape(N, C)           # contiguous reshape: free
    tgt2 = target.reshape(N, C)
    if Np != N or Cp != C:
        # TODO(synk): fold these pad copies into the pallas_call operands
        # (allow_input_fusion) or split the <G-anchor ragged tail into pure JAX.
        pad = ((0, Np - N), (0, Cp - C))
        inp2 = jnp.pad(inp2, pad)
        tgt2 = jnp.pad(tgt2, pad)
    inp_p = inp2.reshape(R, L)         # contiguous reshape: free
    tgt_p = tgt2.reshape(R, L)

    # Tile selection: ~tile_rows rows of 128 lanes per grid step.
    rows = max(8, _round_up(max(1, tile_rows * _LANES // L), 8))
    if R <= rows:
        tile_r = R                     # single block; full dim so any R is legal
        grid = (1,)
    else:
        tile_r = rows                  # multiple of 8
        grid = (pl.cdiv(R, tile_r),)   # partial final block handled by Pallas

    big = pl.BlockSpec((tile_r, L), lambda i: (i, 0))
    in_specs = [big, big]
    args = [inp_p, tgt_p]

    if has_cw:
        cw = jnp.asarray(code_weights, jnp.float32).reshape(C)
        if Cp != C:
            cw = jnp.pad(cw, (0, Cp - C))
        cw_row = jnp.tile(cw, (G,)).reshape(1, L)
        in_specs.append(pl.BlockSpec((1, L), lambda i: (0, 0)))
        args.append(cw_row)

    if has_w:
        assert weights.shape == (B, A)
        w_flat = weights.reshape(N)
        if Np != N:
            w_flat = jnp.pad(w_flat, (0, Np - N))
        w_packed = w_flat.reshape(R, G)              # small stream, 1/Cp of a slab
        # 0/1 lane-expansion matrix: lane l belongs to anchor l // Cp.
        e_mat = (jnp.arange(L, dtype=jnp.int32)[None, :] // Cp
                 == jnp.arange(G, dtype=jnp.int32)[:, None]).astype(jnp.float32)
        in_specs.append(pl.BlockSpec((tile_r, G), lambda i: (i, 0)))
        args.append(w_packed)
        in_specs.append(pl.BlockSpec((G, L), lambda i: (0, 0)))
        args.append(e_mat)

    out_dtype = inp.dtype
    kernel = functools.partial(_wsl1_kernel, beta=float(beta),
                               has_cw=has_cw, has_w=has_w)

    in_isize = jnp.dtype(inp.dtype).itemsize
    out_isize = jnp.dtype(out_dtype).itemsize
    bytes_accessed = 2 * R * L * in_isize + R * L * out_isize
    flops = 8 * R * L
    if has_w:
        bytes_accessed += 4 * (R * G + G * L)
        flops += 2 * R * G * L
    if has_cw:
        bytes_accessed += 4 * L

    out_p = pl.pallas_call(
        kernel,
        out_shape=jax.ShapeDtypeStruct((R, L), out_dtype),
        grid_spec=pl.GridSpec(
            grid=grid,
            in_specs=in_specs,
            out_specs=pl.BlockSpec((tile_r, L), lambda i: (i, 0)),
        ),
        compiler_params=pltpu.CompilerParams(
            # TODO(synk): on v7x evaluate (pltpu.CORE_PARALLEL,) to shard the
            # row grid across both TensorCores; "parallel" is the safe default
            # that compiles on v5e/v6e/v7x alike.
            dimension_semantics=("parallel",)),
        cost_estimate=pl.CostEstimate(flops=flops, transcendentals=0,
                                      bytes_accessed=bytes_accessed),
    )(*args)

    out2 = out_p.reshape(Np, Cp)
    if Np != N or Cp != C:
        out2 = out2[:N, :C]
    return out2.reshape(B, A, C)


def _reference(inp, target, code_weights, weights, beta):
    inp = inp.astype(jnp.float32)
    target = target.astype(jnp.float32)
    target = jnp.where(jnp.isnan(target), inp, target)
    diff = inp - target
    if code_weights is not None:
        diff = diff * jnp.asarray(code_weights, jnp.float32).reshape(1, 1, -1)
    n = jnp.abs(diff)
    if beta < 1e-5:
        loss = n
    else:
        loss = jnp.where(n < beta, 0.5 * n * n / beta, n - 0.5 * beta)
    if weights is not None:
        loss = loss * weights.astype(jnp.float32)[..., None]
    return loss


if __name__ == "__main__":
    beta = 1.0 / 9.0
    key = jax.random.PRNGKey(0)
    ks = jax.random.split(key, 8)

    # Case 1: lane-dense path, ragged anchor count (N % G != 0), multi-step
    # grid with a partial final block, code_weights + anchor weights.
    B, A, C = 2, 260, 8
    inp = jax.random.normal(ks[0], (B, A, C), dtype=jnp.float32)
    target = jax.random.normal(ks[1], (B, A, C), dtype=jnp.float32)
    target = target.at[0, 0, 0].set(jnp.nan)          # exercise the isnan path
    target = target.at[1, 3, 5].set(jnp.nan)
    weights = jax.random.uniform(ks[2], (B, A), dtype=jnp.float32)
    code_weights = jnp.arange(1, C + 1, dtype=jnp.float32) / C

    loss = weighted_smooth_l1_loss(inp, target, code_weights, weights, beta,
                                   tile_rows=8)
    loss = jax.block_until_ready(loss)
    ref = _reference(inp, target, code_weights, weights, beta)
    assert loss.shape == (B, A, C) and loss.dtype == inp.dtype
    assert jnp.allclose(loss, ref, atol=1e-5, rtol=1e-5), "case1 mismatch"

    # Case 2: L1 branch (beta < 1e-5), no code/anchor weights -> specialized
    # two-stream kernel, default (large) tile, single grid step.
    loss2 = jax.block_until_ready(
        weighted_smooth_l1_loss(inp, target, None, None, beta=0.0))
    ref2 = _reference(inp, target, None, None, 0.0)
    assert jnp.allclose(loss2, ref2, atol=1e-5, rtol=1e-5), "case2 mismatch"

    # Case 3: #codes = 7 (does not divide 128) -> code dim padded to 8,
    # still lane-dense.
    B3, A3, C3 = 2, 30, 7
    inp3 = jax.random.normal(ks[3], (B3, A3, C3), dtype=jnp.float32)
    tgt3 = jax.random.normal(ks[4], (B3, A3, C3), dtype=jnp.float32)
    w3 = jax.random.uniform(ks[5], (B3, A3), dtype=jnp.float32)
    cw3 = jnp.linspace(0.5, 1.5, C3, dtype=jnp.float32)
    loss3 = jax.block_until_ready(
        weighted_smooth_l1_loss(inp3, tgt3, cw3, w3, beta))
    ref3 = _reference(inp3, tgt3, cw3, w3, beta)
    assert jnp.allclose(loss3, ref3, atol=1e-5, rtol=1e-5), "case3 mismatch"

    # Case 4: bf16 I/O (kernel streams bf16, computes in f32, emits bf16).
    B4, A4, C4 = 2, 64, 8
    inp4 = jax.random.normal(ks[6], (B4, A4, C4), dtype=jnp.bfloat16)
    tgt4 = jax.random.normal(ks[7], (B4, A4, C4), dtype=jnp.bfloat16)
    loss4 = jax.block_until_ready(
        weighted_smooth_l1_loss(inp4, tgt4, code_weights, None, beta))
    assert loss4.dtype == jnp.bfloat16
    ref4 = _reference(inp4, tgt4, code_weights, None, beta)
    assert jnp.allclose(loss4.astype(jnp.float32), ref4, atol=2e-2, rtol=2e-2), \
        "case4 mismatch"

    print("KERNEL_OK")
</pallas_src>

<mosaic_0001>
module attributes {stable_mosaic.version = 11 : i64} {
  func.func @_wsl1_kernel(%arg0: i32, %arg1: memref<8x128xf32, #tpu.memory_space<vmem>>, %arg2: memref<8x128xf32, #tpu.memory_space<vmem>>, %arg3: memref<1x128xf32, #tpu.memory_space<vmem>>, %arg4: memref<8x16xf32, #tpu.memory_space<vmem>>, %arg5: memref<16x128xf32, #tpu.memory_space<vmem>>, %arg6: memref<8x128xf32, #tpu.memory_space<vmem>>) attributes {dimension_semantics = [#tpu.dimension_semantics<parallel>], iteration_bounds = array<i64: 5>, scalar_prefetch = 0 : i64, scratch_operands = 0 : i64, tpu.core_type = #tpu.core_type<tc>, window_params = [{transform_indices = @transform_0, window_bounds = array<i64: 8, 128>}, {transform_indices = @transform_1, window_bounds = array<i64: 8, 128>}, {pipeline_mode = #tpu.pipeline_mode<synchronous>, transform_indices = @transform_2, window_bounds = array<i64: 1, 128>}, {transform_indices = @transform_3, window_bounds = array<i64: 8, 16>}, {pipeline_mode = #tpu.pipeline_mode<synchronous>, transform_indices = @transform_4, window_bounds = array<i64: 16, 128>}, {transform_indices = @transform_5, window_bounds = array<i64: 8, 128>}]} {
    %c0 = arith.constant 0 : index
    %c0_0 = arith.constant 0 : index
    %0 = vector.load %arg1[%c0, %c0_0] : memref<8x128xf32, #tpu.memory_space<vmem>>, vector<8x128xf32>
    %c0_1 = arith.constant 0 : index
    %c0_2 = arith.constant 0 : index
    %1 = vector.load %arg2[%c0_1, %c0_2] : memref<8x128xf32, #tpu.memory_space<vmem>>, vector<8x128xf32>
    %2 = arith.cmpf one, %1, %1 : vector<8x128xf32>
    %3 = arith.select %2, %0, %1 : vector<8x128xi1>, vector<8x128xf32>
    %4 = arith.subf %0, %3 : vector<8x128xf32>
    %c0_3 = arith.constant 0 : index
    %c0_4 = arith.constant 0 : index
    %5 = vector.load %arg3[%c0_3, %c0_4] : memref<1x128xf32, #tpu.memory_space<vmem>>, vector<1x128xf32>
    %6 = vector.broadcast %5 : vector<1x128xf32> to vector<8x128xf32>
    %7 = arith.mulf %4, %6 : vector<8x128xf32>
    %8 = math.absf %7 : vector<8x128xf32>
    %cst = arith.constant 0.111111112 : f32
    %9 = vector.broadcast %cst : f32 to vector<8x128xf32>
    %10 = arith.cmpf olt, %8, %9 : vector<8x128xf32>
    %11 = arith.mulf %8, %8 : vector<8x128xf32>
    %cst_5 = arith.constant 4.500000e+00 : f32
    %12 = vector.broadcast %cst_5 : f32 to vector<8x128xf32>
    %13 = arith.mulf %11, %12 : vector<8x128xf32>
    %cst_6 = arith.constant 0.055555556 : f32
    %14 = vector.broadcast %cst_6 : f32 to vector<8x128xf32>
    %15 = arith.subf %8, %14 : vector<8x128xf32>
    %16 = arith.select %10, %13, %15 : vector<8x128xi1>, vector<8x128xf32>
    %c0_7 = arith.constant 0 : index
    %c0_8 = arith.constant 0 : index
    %17 = vector.load %arg4[%c0_7, %c0_8] : memref<8x16xf32, #tpu.memory_space<vmem>>, vector<8x16xf32>
    %c0_9 = arith.constant 0 : index
    %c0_10 = arith.constant 0 : index
    %18 = vector.load %arg5[%c0_9, %c0_10] : memref<16x128xf32, #tpu.memory_space<vmem>>, vector<16x128xf32>
    %cst_11 = arith.constant dense<0.000000e+00> : vector<8x128xf32>
    %19 = tpu.matmul %17, %18, %cst_11 {dimension_numbers = #tpu.dot_dimension_numbers<[1], [0], [0], [1], [0, 0, 1, 1], [], []>} : vector<8x16xf32>, vector<16x128xf32>, vector<8x128xf32> -> vector<8x128xf32>
    %20 = arith.mulf %16, %19 : vector<8x128xf32>
    %c0_12 = arith.constant 0 : index
    %c0_13 = arith.constant 0 : index
    %21 = vector.load %arg6[%c0_12, %c0_13] : memref<8x128xf32, #tpu.memory_space<vmem>>, vector<8x128xf32>
    tpu.vector_store %arg6[%c0_12, %c0_13], %20 {strides = array<i32>} : memref<8x128xf32, #tpu.memory_space<vmem>>, vector<8x128xf32>,
    return
  }
  func.func @transform_0(%arg0: i32) -> (i32, i32) {
    %c0_i32 = arith.constant 0 : i32
    %c0_i32_0 = arith.constant 0 : i32
    return %arg0, %c0_i32 : i32, i32
  }
  func.func @transform_1(%arg0: i32) -> (i32, i32) {
    %c0_i32 = arith.constant 0 : i32
    %c0_i32_0 = arith.constant 0 : i32
    return %arg0, %c0_i32 : i32, i32
  }
  func.func @transform_2(%arg0: i32) -> (i32, i32) {
    %c0_i32 = arith.constant 0 : i32
    %c0_i32_0 = arith.constant 0 : i32
    %c0_i32_1 = arith.constant 0 : i32
    return %c0_i32, %c0_i32_0 : i32, i32
  }
  func.func @transform_3(%arg0: i32) -> (i32, i32) {
    %c0_i32 = arith.constant 0 : i32
    %c0_i32_0 = arith.constant 0 : i32
    return %arg0, %c0_i32 : i32, i32
  }
  func.func @transform_4(%arg0: i32) -> (i32, i32) {
    %c0_i32 = arith.constant 0 : i32
    %c0_i32_0 = arith.constant 0 : i32
    %c0_i32_1 = arith.constant 0 : i32
    return %c0_i32, %c0_i32_0 : i32, i32
  }
  func.func @transform_5(%arg0: i32) -> (i32, i32) {
    %c0_i32 = arith.constant 0 : i32
    %c0_i32_0 = arith.constant 0 : i32
    return %arg0, %c0_i32 : i32, i32
  }
}

</mosaic_0001>

<llo_original>
// kernel: tpu_custom_call.1
$region0: #{tpu_custom_call.1}
  #allocation0 [shape = 'u32[]', space=smem, size = 0x4, offset = 0x4, fixed_abs, tag = 'smem constant byte address 0x4 - core index']
  #allocation1 [shape = 'u32[72,128]{1,0:T(1,128)}', space=vmem, size = 0x9000, scoped, tag = 'internal scratch']
  %s0 = inlined_call_operand.vmem [shape: f32[33,128], index: 0, kind: input, shape index: {}]
  %s1 = inlined_call_operand.hbm [shape: f32[33,128], index: 1, kind: input, shape index: {}]
  %s2 = inlined_call_operand.vmem [shape: f32[1,128], index: 2, kind: input, shape index: {}]
  %s3 = inlined_call_operand.vmem [shape: f32[33,16], index: 3, kind: input, shape index: {}]
  %s4 = inlined_call_operand.vmem [shape: f32[16,128], index: 4, kind: input, shape index: {}]
  %s5 = inlined_call_operand.hbm [shape: f32[33,128], index: 5, kind: output, shape index: {}]
  %s6 = sld [smem:[#allocation0]]
  $region57: #{tpu_custom_call.1} parent=0
    _
  %s8 = ssub.s32 1, %s6
  %s9 = scalar_select 0, %s8, %s6
  $region1: #{tpu_custom_call.1} parent=0
    #allocation2 [shape = 'u8[8192]{0}', space=vmem, size = 0x2000, scoped, tag = 'input window, operand 1']
    #allocation3 [shape = 's32[2]{0}', space=sflag, size = 0x8, scoped, tag = 'scoped memory for tpu_custom_call.1']
    #allocation4 [shape = 's32[2]{0}', space=sflag, size = 0x8, scoped, tag = 'scoped memory for tpu_custom_call.1']
    #allocation5 [shape = 'u8[8192]{0}', space=vmem, size = 0x2000, scoped, tag = 'output window, operand 0']
    %10 = vsyncpa [#allocation3], 0
    %s11 = scalar_lea.sflag [#allocation3], 1
    %12 = vsyncpa %s11, 0
    %13 = vsyncpa [#allocation4], 0
    %s14 = scalar_lea.sflag [#allocation4], 1
    %15 = vsyncpa %s14, 0
    loop: start=0, step=1, limit=7
    $region2: #{tpu_custom_call.1} parent=1 // loop_pre_header
      _
    $region3: #{tpu_custom_call.1} parent=1 // loop_header
      %s17 = sphi 0, %s21
      %p18 = scmp.ge.s32.totalorder %s17, 7
      %s27 = sphi 0, %s29
      %s30 = sphi 0, %s27
      %s31 = sphi 0, %s30
      %s47 = sphi 0, %s31
      %s53 = sphi 0, %s55
      %s56 = sphi 0, %s53
      %s57 = sphi 0, %s56
      %s73 = sphi 0, %s57
      %s77 = sphi 0, %s77
      %s79 = sphi 0, %s77
      %s80 = sphi 0, %s79
      %s94 = sphi 0, %s80
      %s100 = sphi 0, %s102
      %s103 = sphi 0, %s100
      %s104 = sphi 0, %s103
      %s120 = sphi 0, %s104
      %s124 = sphi 0, %s124
      %s126 = sphi 0, %s124
      %s127 = sphi 0, %s126
      %s141 = sphi 0, %s127
      %s147 = sphi 0, %s149
      %s150 = sphi 0, %s147
      %s151 = sphi 0, %s150
      %s167 = sphi 0, %s151
    $region4: #{tpu_custom_call.1} parent=1 // loop_header_branch
      %20 = sbr.rel (%p18) target = $region8
    $region5: #{tpu_custom_call.1} parent=1 // loop_body
      %s22 = ssub.s32 %s17, 1
      %s23 = ssub.s32 %s17, 2
      %s24 = sadd.s32 %s17, 1
      %s25 = ssub.s32 %s17, %s24
      %p26 = scmp.eq.s32.totalorder %s25, 0
      %s28 = sadd.s32 %s27, 1
      %s29 = scalar_select %p26, %s27, %s28
      %p32 = pneg %p26
      %p33 = scmp.eq.s32.totalorder %s17, 4
      %p34 = por %p32, %p33
      %p35 = scmp.ne.s32.totalorder %s27, %s30
      %p36 = scmp.eq.s32.totalorder %s17, 0
      %p37 = por %p35, %p36
      %p38 = scmp.ne.s32.totalorder %s27, %s30
      %p39 = scmp.eq.s32.totalorder %s22, 4
      %p40 = por %p38, %p39
      %p41 = scmp.ne.s32.totalorder %s30, %s31
      %p42 = scmp.eq.s32.totalorder %s22, 0
      %p43 = por %p41, %p42
      %p44 = scmp.ne.s32.totalorder %s30, %s31
      %p45 = scmp.eq.s32.totalorder %s23, 4
      %p46 = por %p44, %p45
      %p48 = scmp.ne.s32.totalorder %s31, %s47
      %p49 = scmp.eq.s32.totalorder %s23, 0
      %p50 = por %p48, %p49
      %s51 = ssub.s32 %s17, %s24
      %p52 = scmp.eq.s32.totalorder %s51, 0
      %s54 = sadd.s32 %s53, 1
      %s55 = scalar_select %p52, %s53, %s54
      %p58 = pneg %p52
      %p59 = scmp.eq.s32.totalorder %s17, 4
      %p60 = por %p58, %p59
      %p61 = scmp.ne.s32.totalorder %s53, %s56
      %p62 = scmp.eq.s32.totalorder %s17, 0
      %p63 = por %p61, %p62
      %p64 = scmp.ne.s32.totalorder %s53, %s56
      %p65 = scmp.eq.s32.totalorder %s22, 4
      %p66 = por %p64, %p65
      %p67 = scmp.ne.s32.totalorder %s56, %s57
      %p68 = scmp.eq.s32.totalorder %s22, 0
      %p69 = por %p67, %p68
      %p70 = scmp.ne.s32.totalorder %s56, %s57
      %p71 = scmp.eq.s32.totalorder %s23, 4
      %p72 = por %p70, %p71
      %p74 = scmp.ne.s32.totalorder %s57, %s73
      %p75 = scmp.eq.s32.totalorder %s23, 0
      %p76 = por %p74, %p75
      %s78 = sadd.s32 %s77, 1
      %p81 = scmp.eq.s32.totalorder %s17, 4
      %p82 = scmp.ne.s32.totalorder %s77, %s79
      %p83 = scmp.eq.s32.totalorder %s17, 0
      %p84 = por %p82, %p83
      %p85 = scmp.ne.s32.totalorder %s77, %s79
      %p86 = scmp.eq.s32.totalorder %s22, 4
      %p87 = por %p85, %p86
      %p88 = scmp.ne.s32.totalorder %s79, %s80
      %p89 = scmp.eq.s32.totalorder %s22, 0
      %p90 = por %p88, %p89
      %p91 = scmp.ne.s32.totalorder %s79, %s80
      %p92 = scmp.eq.s32.totalorder %s23, 4
      %p93 = por %p91, %p92
      %p95 = scmp.ne.s32.totalorder %s80, %s94
      %p96 = scmp.eq.s32.totalorder %s23, 0
      %p97 = por %p95, %p96
      %s98 = ssub.s32 %s17, %s24
      %p99 = scmp.eq.s32.totalorder %s98, 0
      %s101 = sadd.s32 %s100, 1
      %s102 = scalar_select %p99, %s100, %s101
      %p105 = pneg %p99
      %p106 = scmp.eq.s32.totalorder %s17, 4
      %p107 = por %p105, %p106
      %p108 = scmp.ne.s32.totalorder %s100, %s103
      %p109 = scmp.eq.s32.totalorder %s17, 0
      %p110 = por %p108, %p109
      %p111 = scmp.ne.s32.totalorder %s100, %s103
      %p112 = scmp.eq.s32.totalorder %s22, 4
      %p113 = por %p111, %p112
      %p114 = scmp.ne.s32.totalorder %s103, %s104
      %p115 = scmp.eq.s32.totalorder %s22, 0
      %p116 = por %p114, %p115
      %p117 = scmp.ne.s32.totalorder %s103, %s104
      %p118 = scmp.eq.s32.totalorder %s23, 4
      %p119 = por %p117, %p118
      %p121 = scmp.ne.s32.totalorder %s104, %s120
      %p122 = scmp.eq.s32.totalorder %s23, 0
      %p123 = por %p121, %p122
      %s125 = sadd.s32 %s124, 1
      %p128 = scmp.eq.s32.totalorder %s17, 4
      %p129 = scmp.ne.s32.totalorder %s124, %s126
      %p130 = scmp.eq.s32.totalorder %s17, 0
      %p131 = por %p129, %p130
      %p132 = scmp.ne.s32.totalorder %s124, %s126
      %p133 = scmp.eq.s32.totalorder %s22, 4
      %p134 = por %p132, %p133
      %p135 = scmp.ne.s32.totalorder %s126, %s127
      %p136 = scmp.eq.s32.totalorder %s22, 0
      %p137 = por %p135, %p136
      %p138 = scmp.ne.s32.totalorder %s126, %s127
      %p139 = scmp.eq.s32.totalorder %s23, 4
      %p140 = por %p138, %p139
      %p142 = scmp.ne.s32.totalorder %s127, %s141
      %p143 = scmp.eq.s32.totalorder %s23, 0
      %p144 = por %p142, %p143
      %s145 = ssub.s32 %s17, %s24
      %p146 = scmp.eq.s32.totalorder %s145, 0
      %s148 = sadd.s32 %s147, 1
      %s149 = scalar_select %p146, %s147, %s148
      %p152 = pneg %p146
      %p153 = scmp.eq.s32.totalorder %s17, 4
      %p154 = por %p152, %p153
      %p155 = scmp.ne.s32.totalorder %s147, %s150
      %p156 = scmp.eq.s32.totalorder %s17, 0
      %p157 = por %p155, %p156
      %p158 = scmp.ne.s32.totalorder %s147, %s150
      %p159 = scmp.eq.s32.totalorder %s22, 4
      %p160 = por %p158, %p159
      %p161 = scmp.ne.s32.totalorder %s150, %s151
      %p162 = scmp.eq.s32.totalorder %s22, 0
      %p163 = por %p161, %p162
      %p164 = scmp.ne.s32.totalorder %s150, %s151
      %p165 = scmp.eq.s32.totalorder %s23, 4
      %p166 = por %p164, %p165
      %p168 = scmp.ne.s32.totalorder %s151, %s167
      %p169 = scmp.eq.s32.totalorder %s23, 0
      %p170 = por %p168, %p169
      %p171 = scmp.le.s32.totalorder 1, %s17
      %p172 = scmp.lt.s32.totalorder %s17, 6
      %p173 = pnand %p171, %p172
      %p174 = pneg %p173
      // Predicated region
      $region9: #{tpu_custom_call.1} parent=5 // pred_check
        _
      $region10: #{tpu_custom_call.1} parent=5 // pred_check_branch
        %176 = sbr.rel (%p173) target = $region12
      $region11: #{tpu_custom_call.1} parent=5 // pred_region
        %s177 = ssub.s32 %s17, 1
        // Predicated region
        $region13: #{tpu_custom_call.1} parent=11 // pred_check
          %p178 = pneg %p90
        $region14: #{tpu_custom_call.1} parent=11 // pred_check_branch
          %180 = sbr.rel (%p178) target = $region16
        $region15: #{tpu_custom_call.1} parent=11 // pred_region
          _
        $region16: #{tpu_custom_call.1} parent=11 // pred_fallthru
          _
        // Predicated region
        $region17: #{tpu_custom_call.1} parent=11 // pred_check
          %p181 = pneg %p137
        $region18: #{tpu_custom_call.1} parent=11 // pred_check_branch
          %183 = sbr.rel (%p181) target = $region20
        $region19: #{tpu_custom_call.1} parent=11 // pred_region
          _
        $region20: #{tpu_custom_call.1} parent=11 // pred_fallthru
          _
      $region12: #{tpu_custom_call.1} parent=5 // pred_fallthru
        _
      %p184 = scmp.lt.s32.totalorder %s17, 5
      // Predicated region
      $region21: #{tpu_custom_call.1} parent=5 // pred_check
        %p185 = pneg %p184
      $region22: #{tpu_custom_call.1} parent=5 // pred_check_branch
        %187 = sbr.rel (%p185) target = $region24
      $region23: #{tpu_custom_call.1} parent=5 // pred_region
        // Predicated region
        $region25: #{tpu_custom_call.1} parent=23 // pred_check
          %p188 = pneg %p37
        $region26: #{tpu_custom_call.1} parent=23 // pred_check_branch
          %190 = sbr.rel (%p188) target = $region28
        $region27: #{tpu_custom_call.1} parent=23 // pred_region
          %p191 = scmp.lt.s32.totalorder %s17, 4
          %s192 = scalar_select %p191, %s17, 4
          %s193 = smul.addr %s192, 8
          %s194 = scalar_lea.vmem %s0, %s193
        $region28: #{tpu_custom_call.1} parent=23 // pred_fallthru
          _
        // Predicated region
        $region29: #{tpu_custom_call.1} parent=23 // pred_check
          %p195 = pneg %p63
        $region30: #{tpu_custom_call.1} parent=23 // pred_check_branch
          %197 = sbr.rel (%p195) target = $region32
        $region31: #{tpu_custom_call.1} parent=23 // pred_region
          %s198 = sand.u32 %s53, 1
          %s199 = scalar_lea.sflag [#allocation3], %s198
          %s200 = sand.u32 %s53, 1
          %s201 = smul.addr %s200, 8
          %s202 = scalar_lea.vmem [#allocation2], %s201
          %204 = vsyncadd %s199, 0
          %s205 = smul.addr %s17, 8
          %s206 = scalar_lea.hbm %s1, %s205
          %s208 = sshll.u32 %s206, 4
          %s209 = int_to_ptr.hbm [resolvable:$true] %s208
          %s210 = sshll.u32 %s202, 4
          %s211 = int_to_ptr.vmem [resolvable:$true] %s210
          %213 = dma.hbm_to_vmem [thread:$0]  %s209, 128, %s211, %s199
        $region32: #{tpu_custom_call.1} parent=23 // pred_fallthru
          _
        // Predicated region
        $region33: #{tpu_custom_call.1} parent=23 // pred_check
          %p214 = pneg %p110
        $region34: #{tpu_custom_call.1} parent=23 // pred_check_branch
          %216 = sbr.rel (%p214) target = $region36
        $region35: #{tpu_custom_call.1} parent=23 // pred_region
          %p217 = scmp.lt.s32.totalorder %s17, 4
          %s218 = scalar_select %p217, %s17, 4
          %s219 = smul.addr %s218, 8
          %s220 = scalar_lea.vmem %s3, %s219
        $region36: #{tpu_custom_call.1} parent=23 // pred_fallthru
          _
      $region24: #{tpu_custom_call.1} parent=5 // pred_fallthru
        _
      %p221 = scmp.le.s32.totalorder 1, %s17
      %p222 = scmp.lt.s32.totalorder %s17, 6
      %p223 = pnand %p221, %p222
      %p224 = pneg %p223
      // Predicated region
      $region37: #{tpu_custom_call.1} parent=5 // pred_check
        _
      $region38: #{tpu_custom_call.1} parent=5 // pred_check_branch
        %226 = sbr.rel (%p223) target = $region40
      $region39: #{tpu_custom_call.1} parent=5 // pred_region
        %s227 = ssub.s32 %s17, 1
        %s228 = sand.u32 %s56, 1
        %s229 = scalar_lea.sflag [#allocation3], %s228
        %s230 = sand.u32 %s56, 1
        %s231 = smul.addr %s230, 8
        %s232 = scalar_lea.vmem [#allocation2], %s231
        // Predicated region
        $region41: #{tpu_custom_call.1} parent=39 // pred_check
          %p233 = pneg %p69
        $region42: #{tpu_custom_call.1} parent=39 // pred_check_branch
          %235 = sbr.rel (%p233) target = $region44
        $region43: #{tpu_custom_call.1} parent=39 // pred_region
          %237 = dma.done %s229, 128
        $region44: #{tpu_custom_call.1} parent=39 // pred_fallthru
          _
        %p238 = scmp.lt.s32.totalorder %s22, 4
        %s239 = scalar_select %p238, %s22, 4
        %s240 = smul.addr %s239, 8
        %s241 = scalar_lea.vmem %s0, %s240
        %p242 = pneg %p43
        %p243 = pneg %p40
        %s244 = sand.u32 %s56, 1
        %s245 = scalar_lea.sflag [#allocation3], %s244
        %s246 = sand.u32 %s56, 1
        %s247 = smul.addr %s246, 8
        %s248 = scalar_lea.vmem [#allocation2], %s247
        %p249 = pneg %p69
        %p250 = pneg %p66
        %p251 = pneg %p90
        %p252 = pneg %p87
        %p253 = scmp.lt.s32.totalorder %s22, 4
        %s254 = scalar_select %p253, %s22, 4
        %s255 = smul.addr %s254, 8
        %s256 = scalar_lea.vmem %s3, %s255
        %p257 = pneg %p116
        %p258 = pneg %p113
        %p259 = pneg %p137
        %p260 = pneg %p134
        %p261 = pneg %p163
        %p262 = pneg %p160
        %s263 = sand.u32 %s150, 1
        %s264 = scalar_lea.sflag [#allocation4], %s263
        %s265 = sand.u32 %s150, 1
        %s266 = smul.addr %s265, 8
        %s267 = scalar_lea.vmem [#allocation5], %s266
        %p268 = scmp.lt.s32.totalorder %s22, 4
        %s269 = scalar_select %p268, %s22, 4
        %s270 = smul.addr %s269, 8
        %s271 = scalar_lea.vmem %s0, %s270
        %p272 = scmp.lt.s32.totalorder %s22, 4
        %s273 = scalar_select %p272, %s22, 4
        %s274 = smul.addr %s273, 8
        %s275 = scalar_lea.vmem %s3, %s274
        %v276 = vld [vmem:[%s271] sm:$0xff]
        %v277 = vld [vmem:[%s232] sm:$0xff]
        %vm278 = vcmp.ne.f32.partialorder %v277, %v277
        %v279 = vsel %vm278, %v276, %v277
        %v280 = vsub.f32 %v276, %v279
        %v281 = vld [vmem:[%s2] sm:$0x1]
        %v283 = vperm.slane %v281, 0
        %v285 = vmul.f32 %v280, %v283
        %v286 = vand.u32 2147483647, %v285
        %vm287 = vcmp.lt.f32.partialorder %v286, 0.11111111
        %v288 = vmul.f32 %v286, %v286
        %v289 = vmul.f32 %v288, 4.5
        %v290 = vsub.f32 %v286, 0.055555556
        %v291 = vsel %vm287, %v289, %v290
        %v292 = vld [vmem:[%s275] sm:$0xff]
        %v293 = vld [vmem:[%s4] sm:$0xff]
        %v294 = vld [vmem:[%s4 + $0x8] sm:$0xff]
        %vm295 = vcmask 130048
        %v297 = vsel %vm295, %v292, 0
        %299 = vmatpush.msra.mxu0 0.0
        %300 = vmatpush.msra.mxu0 0.0
        %301 = vmatpush.msra.mxu0 0.0
        %302 = vmatpush.msra.mxu0 0.0
        %303 = vmatpush.msra.mxu0 0.0
        %304 = vmatpush.msra.mxu0 0.0
        %305 = vmatpush.msra.mxu0 0.0
        %306 = vmatpush.msra.mxu0 0.0
        %307 = vmatpush.msra.mxu0 0.0
        %308 = vmatpush.msra.mxu0 0.0
        %309 = vmatpush.msra.mxu0 0.0
        %310 = vmatpush.msra.mxu0 0.0
        %311 = vmatpush.msra.mxu0 0.0
        %312 = vmatpush.msra.mxu0 0.0
        %313 = vmatpush.msra.mxu0 %v294
        %314 = vmatpush.msra.mxu0 %v293
        %315 = vmatmul.f32.gmra.mxu0 %v297
        %v316 = vpop.f32.mrf.mxu0
        %v317 = vadd.f32 0.0, %v316
        %318 = vdwg.mxu0
        %v319 = vmul.f32 %v291, %v317
        %320 = vst [vmem:[%s267] sm:$0xff] %v319
        %s321 = sand.u32 %s150, 1
        %s322 = scalar_lea.sflag [#allocation4], %s321
        %s323 = sand.u32 %s150, 1
        %s324 = smul.addr %s323, 8
        %s325 = scalar_lea.vmem [#allocation5], %s324
        // Predicated region
        $region45: #{tpu_custom_call.1} parent=39 // pred_check
          %p326 = pneg %p160
        $region46: #{tpu_custom_call.1} parent=39 // pred_check_branch
          %328 = sbr.rel (%p326) target = $region48
        $region47: #{tpu_custom_call.1} parent=39 // pred_region
          %330 = vsyncadd %s322, 0
          %s331 = smul.addr %s22, 8
          %s332 = scalar_lea.hbm %s5, %s331
          %s334 = sshll.u32 %s325, 4
          %s335 = int_to_ptr.vmem [resolvable:$true] %s334
          %s336 = sshll.u32 %s332, 4
          %s337 = int_to_ptr.hbm [resolvable:$true] %s336
          %339 = dma.vmem_to_hbm [thread:$0]  %s335, 128, %s337, %s322
        $region48: #{tpu_custom_call.1} parent=39 // pred_fallthru
          _
      $region40: #{tpu_custom_call.1} parent=5 // pred_fallthru
        _
      %p340 = scmp.le.s32.totalorder 2, %s17
      // Predicated region
      $region49: #{tpu_custom_call.1} parent=5 // pred_check
        %p341 = pneg %p340
      $region50: #{tpu_custom_call.1} parent=5 // pred_check_branch
        %343 = sbr.rel (%p341) target = $region52
      $region51: #{tpu_custom_call.1} parent=5 // pred_region
        %s344 = ssub.s32 %s17, 2
        // Predicated region
        $region53: #{tpu_custom_call.1} parent=51 // pred_check
          %p345 = pneg %p166
        $region54: #{tpu_custom_call.1} parent=51 // pred_check_branch
          %347 = sbr.rel (%p345) target = $region56
        $region55: #{tpu_custom_call.1} parent=51 // pred_region
          %s348 = sand.u32 %s151, 1
          %s349 = scalar_lea.sflag [#allocation4], %s348
          %s350 = sand.u32 %s151, 1
          %s351 = smul.addr %s350, 8
          %s352 = scalar_lea.vmem [#allocation5], %s351
          %354 = dma.done %s349, 128
        $region56: #{tpu_custom_call.1} parent=51 // pred_fallthru
          _
      $region52: #{tpu_custom_call.1} parent=5 // pred_fallthru
        _
    $region6: #{tpu_custom_call.1} parent=1 // loop_footer
      %s21 = sadd.s32 1, %s17
    $region7: #{tpu_custom_call.1} parent=1 // loop_footer_branch
      %16 = sbr.rel target = $region3
    $region8: #{tpu_custom_call.1} parent=1 // loop_exit
      _
    %355 = vsyncpa [#allocation3], 1
    %s356 = scalar_lea.sflag [#allocation3], 1
    %357 = vsyncpa %s356, 1
    %358 = vsyncpa [#allocation4], 1
    %s359 = scalar_lea.sflag [#allocation4], 1
    %360 = vsyncpa %s359, 1

</llo_original>
